<compile_context>
chip_gen: v6e
topology: v6e:2x2x1
jax: 0.10.0
libtpu: 0.0.40
codegen_flags: <defaults>
</compile_context>

<pallas_src>
import functools

import jax
import jax.numpy as jnp
from jax import lax
from jax.experimental import pallas as pl
from jax.experimental.pallas import tpu as pltpu

# float32 machine epsilon, same as torch.finfo(torch.float32).eps
_EPS_F32 = float(jnp.finfo(jnp.float32).eps)


def _round_up(x, m):
    return ((x + m - 1) // m) * m


def _default_num_parallel():
    """TensorCores per chip: 2 on v7x, 1 on v5e/v6e."""
    try:
        kind = jax.devices()[0].device_kind.lower()
    except Exception:
        return 1
    return 2 if ("v7" in kind or "7x" in kind) else 1


def _log_l1_partial_kernel(x_ref, y_ref, out_ref, acc_ref, *,
                           epsilon, n_rows, row_tile, num_blocks):
    """Per-chunk partial sum of |log((eps+y)/(eps+x))| over row tiles."""
    i = pl.program_id(0)              # parallel chunk axis (megacore on v7x)
    j = pl.program_id(1)              # sequential reduction axis
    inner = pl.num_programs(1)

    @pl.when(j == 0)
    def _():
        acc_ref[...] = jnp.zeros_like(acc_ref)

    blk = i * inner + j               # logical (unclamped) block index
    start = blk * row_tile

    def accumulate(diff):
        # (rt, freq) -> (8, freq): layout-preserving fold (each (8,128) group
        # is one vreg), pure vreg adds into a tiny accumulator instead of a
        # full-tile VMEM read-modify-write.
        acc_ref[...] += diff.reshape(row_tile // 8, 8, diff.shape[-1]).sum(axis=0)

    # Fast path: full tile, no masking work (the overwhelming majority).
    @pl.when(start + row_tile <= n_rows)
    def _():
        x = x_ref[...].astype(jnp.float32)
        y = y_ref[...].astype(jnp.float32)
        accumulate(jnp.abs(jnp.log((epsilon + y) / (epsilon + x))))

    # Slow path: the ragged tail tile only. Clamped duplicate blocks
    # (blk >= num_blocks) match neither branch and are skipped entirely.
    @pl.when((blk < num_blocks) & (start + row_tile > n_rows))
    def _():
        row_ids = start + lax.broadcasted_iota(jnp.int32, x_ref.shape, 0)
        valid = row_ids < n_rows
        # Mask BEFORE the log so invalid rows contribute exactly 0.
        x = jnp.where(valid, x_ref[...].astype(jnp.float32), 1.0)
        y = jnp.where(valid, y_ref[...].astype(jnp.float32), 1.0)
        accumulate(jnp.abs(jnp.log((epsilon + y) / (epsilon + x))))

    # Single cross-lane/sublane reduce per chunk, on its last step.
    @pl.when(j == inner - 1)
    def _():
        out_ref[0, 0] = jnp.sum(acc_ref[...])


def log_stft_magnitude_loss(x_mag, y_mag, epsilon=_EPS_F32, *,
                            row_tile=4096, num_parallel=None):
    """Log STFT magnitude loss, matching F.l1_loss(log(eps+y), log(eps+x))."""
    assert x_mag.shape == y_mag.shape
    b, frames, freq = x_mag.shape
    n_rows = b * frames
    n_elems = n_rows * freq

    # Free collapsing reshape; keep the native dtype (no pad / upcast / reflow
    # copy — a wrapper-side relayout would double HBM traffic for this
    # single-pass kernel).
    x2 = x_mag.reshape(n_rows, freq)
    y2 = y_mag.reshape(n_rows, freq)

    # Row tile: multiple of 8 sublanes, sized so 2 inputs x 2 pipeline buffers
    # stay under ~24 MiB VMEM (the accumulator is now a single (8, freq) row).
    budget = 24 * 1024 * 1024
    per_row_bytes = 4 * freq * x2.dtype.itemsize      # 2 inputs x 2 buffers
    max_rows = max(8, (budget // per_row_bytes) // 8 * 8)
    rt = max(8, min(_round_up(row_tile, 8), _round_up(n_rows, 8), max_rows))

    num_blocks = pl.cdiv(n_rows, rt)
    if num_parallel is None:
        num_parallel = _default_num_parallel()
    p = max(1, min(int(num_parallel), num_blocks))
    inner = pl.cdiv(num_blocks, p)

    def in_map(i, j):
        # Clamp so overshooting chunks re-read the last valid block; the
        # kernel skips compute for those duplicates.
        return (jnp.minimum(i * inner + j, num_blocks - 1), 0)

    kernel = functools.partial(
        _log_l1_partial_kernel,
        epsilon=float(epsilon),   # Python scalars -> literals, not captured consts
        n_rows=int(n_rows),
        row_tile=int(rt),
        num_blocks=int(num_blocks),
    )

    partials = pl.pallas_call(
        kernel,
        out_shape=jax.ShapeDtypeStruct((p, 1), jnp.float32),
        grid_spec=pltpu.PrefetchScalarGridSpec(
            num_scalar_prefetch=0,
            grid=(p, inner),
            in_specs=[
                pl.BlockSpec((rt, freq), in_map),
                pl.BlockSpec((rt, freq), in_map),
            ],
            out_specs=pl.BlockSpec((1, 1), lambda i, j: (i, 0),
                                   memory_space=pltpu.SMEM),
            scratch_shapes=[pltpu.VMEM((8, freq), jnp.float32)],
        ),
        compiler_params=pltpu.CompilerParams(
            dimension_semantics=("parallel", "arbitrary"),
            vmem_limit_bytes=32 * 1024 * 1024,
        ),
        cost_estimate=pl.CostEstimate(
            flops=5 * n_elems,
            transcendentals=n_elems,
            bytes_accessed=2 * n_elems * x2.dtype.itemsize + p * 4,
        ),
    )(x2, y2)

    return jnp.sum(partials) / jnp.float32(n_elems)


if __name__ == "__main__":
    key = jax.random.PRNGKey(0)
    kx, ky = jax.random.split(key)

    # Magnitude spectrograms: (B, #frames, #freq_bins), strictly non-negative.
    B, FRAMES, FREQ = 2, 16, 128
    x_mag = jnp.abs(jax.random.normal(kx, (B, FRAMES, FREQ), dtype=jnp.float32))
    y_mag = jnp.abs(jax.random.normal(ky, (B, FRAMES, FREQ), dtype=jnp.float32))

    loss = jax.block_until_ready(log_stft_magnitude_loss(x_mag, y_mag))
    ref = jnp.mean(jnp.abs(jnp.log(_EPS_F32 + y_mag) - jnp.log(_EPS_F32 + x_mag)))
    assert jnp.allclose(loss, ref, rtol=1e-5, atol=1e-6), (loss, ref)

    # Ragged shape + small tiles exercise the in-kernel tail-mask slow path,
    # the clamped/skipped duplicate block and the parallel partial-sum path.
    x_r = jnp.abs(jax.random.normal(kx, (3, 11, 128), dtype=jnp.float32))
    y_r = jnp.abs(jax.random.normal(ky, (3, 11, 128), dtype=jnp.float32))
    loss_r = jax.block_until_ready(
        log_stft_magnitude_loss(x_r, y_r, row_tile=8, num_parallel=2))
    ref_r = jnp.mean(jnp.abs(jnp.log(_EPS_F32 + y_r) - jnp.log(_EPS_F32 + x_r)))
    assert jnp.allclose(loss_r, ref_r, rtol=1e-5, atol=1e-6), (loss_r, ref_r)

    print("KERNEL_OK")
</pallas_src>

<mosaic_0001>
module attributes {stable_mosaic.version = 11 : i64} {
  func.func @_log_l1_partial_kernel(%arg0: i32, %arg1: i32, %arg2: memref<32x128xf32, #tpu.memory_space<vmem>>, %arg3: memref<32x128xf32, #tpu.memory_space<vmem>>, %arg4: memref<1x1xf32, #tpu.memory_space<smem>>, %arg5: memref<8x128xf32, #tpu.memory_space<vmem>>) attributes {dimension_semantics = [#tpu.dimension_semantics<parallel>, #tpu.dimension_semantics<arbitrary>], iteration_bounds = array<i64: 1, 1>, scalar_prefetch = 0 : i64, scratch_operands = 1 : i64, tpu.core_type = #tpu.core_type<tc>, window_params = [{transform_indices = @transform_0, window_bounds = array<i64: 32, 128>}, {transform_indices = @transform_1, window_bounds = array<i64: 32, 128>}, {transform_indices = @transform_2, window_bounds = array<i64: 1, 1>}]} {
    %c0_i32 = arith.constant 0 : i32
    %0 = arith.cmpi eq, %arg1, %c0_i32 : i32
    %1 = arith.extui %0 : i1 to i32
    %c0_i32_0 = arith.constant 0 : i32
    %2 = arith.cmpi ne, %1, %c0_i32_0 : i32
    scf.if %2 {
      %cst = arith.constant 0.000000e+00 : f32
      %19 = vector.broadcast %cst : f32 to vector<8x128xf32>
      %c0 = arith.constant 0 : index
      %c0_10 = arith.constant 0 : index
      %20 = vector.load %arg5[%c0, %c0_10] : memref<8x128xf32, #tpu.memory_space<vmem>>, vector<8x128xf32>
      tpu.vector_store %arg5[%c0, %c0_10], %19 {strides = array<i32>} : memref<8x128xf32, #tpu.memory_space<vmem>>, vector<8x128xf32>,
    } else {
    }
    %c1_i32 = arith.constant 1 : i32
    %3 = arith.muli %arg0, %c1_i32 : i32
    %4 = arith.addi %3, %arg1 : i32
    %c32_i32 = arith.constant 32 : i32
    %5 = arith.muli %4, %c32_i32 : i32
    %c32_i32_1 = arith.constant 32 : i32
    %6 = arith.addi %5, %c32_i32_1 : i32
    %c32_i32_2 = arith.constant 32 : i32
    %7 = arith.cmpi sle, %6, %c32_i32_2 : i32
    %8 = arith.extui %7 : i1 to i32
    %c0_i32_3 = arith.constant 0 : i32
    %9 = arith.cmpi ne, %8, %c0_i32_3 : i32
    scf.if %9 {
      %c0 = arith.constant 0 : index
      %c0_10 = arith.constant 0 : index
      %19 = vector.load %arg2[%c0, %c0_10] : memref<32x128xf32, #tpu.memory_space<vmem>>, vector<32x128xf32>
      %c0_11 = arith.constant 0 : index
      %c0_12 = arith.constant 0 : index
      %20 = vector.load %arg3[%c0_11, %c0_12] : memref<32x128xf32, #tpu.memory_space<vmem>>, vector<32x128xf32>
      %cst = arith.constant 1.1920929E-7 : f32
      %21 = vector.broadcast %cst : f32 to vector<32x128xf32>
      %22 = arith.addf %21, %20 : vector<32x128xf32>
      %cst_13 = arith.constant 1.1920929E-7 : f32
      %23 = vector.broadcast %cst_13 : f32 to vector<32x128xf32>
      %24 = arith.addf %23, %19 : vector<32x128xf32>
      %25 = arith.divf %22, %24 : vector<32x128xf32>
      %26 = math.log %25 : vector<32x128xf32>
      %27 = math.absf %26 : vector<32x128xf32>
      %c0_14 = arith.constant 0 : index
      %c0_15 = arith.constant 0 : index
      %28 = vector.load %arg5[%c0_14, %c0_15] : memref<8x128xf32, #tpu.memory_space<vmem>>, vector<8x128xf32>
      %29 = vector.shape_cast %27 : vector<32x128xf32> to vector<4x8x128xf32>
      %cst_16 = arith.constant dense<0.000000e+00> : vector<8x128xf32>
      %30 = vector.multi_reduction <add>, %29, %cst_16 [0] : vector<4x8x128xf32> to vector<8x128xf32>
      %31 = arith.addf %28, %30 : vector<8x128xf32>
      %c0_17 = arith.constant 0 : index
      %c0_18 = arith.constant 0 : index
      %32 = vector.load %arg5[%c0_17, %c0_18] : memref<8x128xf32, #tpu.memory_space<vmem>>, vector<8x128xf32>
      tpu.vector_store %arg5[%c0_17, %c0_18], %31 {strides = array<i32>} : memref<8x128xf32, #tpu.memory_space<vmem>>, vector<8x128xf32>,
    } else {
    }
    %c1_i32_4 = arith.constant 1 : i32
    %10 = arith.cmpi slt, %4, %c1_i32_4 : i32
    %c32_i32_5 = arith.constant 32 : i32
    %11 = arith.addi %5, %c32_i32_5 : i32
    %c32_i32_6 = arith.constant 32 : i32
    %12 = arith.cmpi sgt, %11, %c32_i32_6 : i32
    %13 = arith.andi %10, %12 : i1
    %14 = arith.extui %13 : i1 to i32
    %c0_i32_7 = arith.constant 0 : i32
    %15 = arith.cmpi ne, %14, %c0_i32_7 : i32
    scf.if %15 {
      %19 = tpu.iota {dimensions = array<i32: 0>} : vector<32x128xi32>
      %20 = vector.broadcast %5 : i32 to vector<32x128xi32>
      %21 = arith.addi %20, %19 : vector<32x128xi32>
      %c32_i32_10 = arith.constant 32 : i32
      %22 = vector.broadcast %c32_i32_10 : i32 to vector<32x128xi32>
      %23 = arith.cmpi slt, %21, %22 : vector<32x128xi32>
      %c0 = arith.constant 0 : index
      %c0_11 = arith.constant 0 : index
      %24 = vector.load %arg2[%c0, %c0_11] : memref<32x128xf32, #tpu.memory_space<vmem>>, vector<32x128xf32>
      %cst = arith.constant 1.000000e+00 : f32
      %25 = vector.broadcast %cst : f32 to vector<32x128xf32>
      %26 = arith.select %23, %24, %25 : vector<32x128xi1>, vector<32x128xf32>
      %c0_12 = arith.constant 0 : index
      %c0_13 = arith.constant 0 : index
      %27 = vector.load %arg3[%c0_12, %c0_13] : memref<32x128xf32, #tpu.memory_space<vmem>>, vector<32x128xf32>
      %cst_14 = arith.constant 1.000000e+00 : f32
      %28 = vector.broadcast %cst_14 : f32 to vector<32x128xf32>
      %29 = arith.select %23, %27, %28 : vector<32x128xi1>, vector<32x128xf32>
      %cst_15 = arith.constant 1.1920929E-7 : f32
      %30 = vector.broadcast %cst_15 : f32 to vector<32x128xf32>
      %31 = arith.addf %30, %29 : vector<32x128xf32>
      %cst_16 = arith.constant 1.1920929E-7 : f32
      %32 = vector.broadcast %cst_16 : f32 to vector<32x128xf32>
      %33 = arith.addf %32, %26 : vector<32x128xf32>
      %34 = arith.divf %31, %33 : vector<32x128xf32>
      %35 = math.log %34 : vector<32x128xf32>
      %36 = math.absf %35 : vector<32x128xf32>
      %c0_17 = arith.constant 0 : index
      %c0_18 = arith.constant 0 : index
      %37 = vector.load %arg5[%c0_17, %c0_18] : memref<8x128xf32, #tpu.memory_space<vmem>>, vector<8x128xf32>
      %38 = vector.shape_cast %36 : vector<32x128xf32> to vector<4x8x128xf32>
      %cst_19 = arith.constant dense<0.000000e+00> : vector<8x128xf32>
      %39 = vector.multi_reduction <add>, %38, %cst_19 [0] : vector<4x8x128xf32> to vector<8x128xf32>
      %40 = arith.addf %37, %39 : vector<8x128xf32>
      %c0_20 = arith.constant 0 : index
      %c0_21 = arith.constant 0 : index
      %41 = vector.load %arg5[%c0_20, %c0_21] : memref<8x128xf32, #tpu.memory_space<vmem>>, vector<8x128xf32>
      tpu.vector_store %arg5[%c0_20, %c0_21], %40 {strides = array<i32>} : memref<8x128xf32, #tpu.memory_space<vmem>>, vector<8x128xf32>,
    } else {
    }
    %c0_i32_8 = arith.constant 0 : i32
    %16 = arith.cmpi eq, %arg1, %c0_i32_8 : i32
    %17 = arith.extui %16 : i1 to i32
    %c0_i32_9 = arith.constant 0 : i32
    %18 = arith.cmpi ne, %17, %c0_i32_9 : i32
    scf.if %18 {
      %c0 = arith.constant 0 : index
      %c0_10 = arith.constant 0 : index
      %19 = vector.load %arg5[%c0, %c0_10] : memref<8x128xf32, #tpu.memory_space<vmem>>, vector<8x128xf32>
      %20 = vector.shape_cast %19 : vector<8x128xf32> to vector<1x8x128xf32>
      %cst = arith.constant dense<0.000000e+00> : vector<1xf32>
      %21 = vector.multi_reduction <add>, %20, %cst [1, 2] : vector<1x8x128xf32> to vector<1xf32>
      %22 = vector.shape_cast %21 : vector<1xf32> to vector<1x1x1xf32>
      %23 = vector.extract %22[0, 0, 0] : f32 from vector<1x1x1xf32>
      %c0_11 = arith.constant 0 : index
      %c0_12 = arith.constant 0 : index
      %24 = memref.load %arg4[%c0_11, %c0_12] : memref<1x1xf32, #tpu.memory_space<smem>>
      memref.store %23, %arg4[%c0_11, %c0_12] : memref<1x1xf32, #tpu.memory_space<smem>>
    } else {
    }
    return
  }
  func.func @transform_0(%arg0: i32, %arg1: i32) -> (i32, i32) {
    %c1_i32 = arith.constant 1 : i32
    %0 = arith.muli %arg0, %c1_i32 : i32
    %1 = arith.addi %0, %arg1 : i32
    %c0_i32 = arith.constant 0 : i32
    %2 = arith.minsi %1, %c0_i32 : i32
    %c0_i32_0 = arith.constant 0 : i32
    %c0_i32_1 = arith.constant 0 : i32
    return %2, %c0_i32_0 : i32, i32
  }
  func.func @transform_1(%arg0: i32, %arg1: i32) -> (i32, i32) {
    %c1_i32 = arith.constant 1 : i32
    %0 = arith.muli %arg0, %c1_i32 : i32
    %1 = arith.addi %0, %arg1 : i32
    %c0_i32 = arith.constant 0 : i32
    %2 = arith.minsi %1, %c0_i32 : i32
    %c0_i32_0 = arith.constant 0 : i32
    %c0_i32_1 = arith.constant 0 : i32
    return %2, %c0_i32_0 : i32, i32
  }
  func.func @transform_2(%arg0: i32, %arg1: i32) -> (i32, i32) {
    %c0_i32 = arith.constant 0 : i32
    %c0_i32_0 = arith.constant 0 : i32
    return %arg0, %c0_i32 : i32, i32
  }
}

</mosaic_0001>

<llo_original>
// kernel: tpu_custom_call.1
$region0: #{tpu_custom_call.1}
  #allocation0 [shape = 'u32[]', space=smem, size = 0x4, offset = 0x4, fixed_abs, tag = 'smem constant byte address 0x4 - core index']
  #allocation1 [shape = 'u32[144,128]{1,0:T(1,128)}', space=vmem, size = 0x12000, scoped, tag = 'internal scratch']
  #allocation2 [shape = 'f32[8,128]{1,0:T(8,128)}', space=vmem, size = 0x1000, scoped, tag = 'scratch operand']
  %s0 = inlined_call_operand.hbm [shape: f32[32,128], index: 0, kind: input, shape index: {}]
  %s1 = inlined_call_operand.hbm [shape: f32[32,128], index: 1, kind: input, shape index: {}]
  %s2 = inlined_call_operand.hbm [shape: f32[1,1], index: 2, kind: output, shape index: {}]
  %s3 = sld [smem:[#allocation0]]
  $region42: #{tpu_custom_call.1} parent=0
    _
  %s5 = ssub.s32 1, %s3
  %s6 = scalar_select 0, %s5, %s3
  $region1: #{tpu_custom_call.1} parent=0
    #allocation3 [shape = 'u8[16384]{0}', space=vmem, size = 0x4000, scoped, tag = 'input window, operand 0, single buffered']
    #allocation4 [shape = 's32[1]{0}', space=sflag, size = 0x4, scoped, tag = 'scoped memory for tpu_custom_call.1']
    #allocation5 [shape = 's32[1]{0}', space=sflag, size = 0x4, scoped, tag = 'scoped memory for tpu_custom_call.1']
    #allocation6 [shape = 'u8[16384]{0}', space=vmem, size = 0x4000, scoped, tag = 'input window, operand 1, single buffered']
    #allocation7 [shape = 's32[1]{0}', space=sflag, size = 0x4, scoped, tag = 'scoped memory for tpu_custom_call.1']
    #allocation8 [shape = 'u8[512]{0}', space=smem, size = 0x200, scoped, tag = 'output window, operand 0, single buffered']
    %7 = vsyncpa [#allocation4], 0
    %8 = vsyncpa [#allocation7], 0
    %9 = vsyncpa [#allocation5], 0
    // Predicated region
    $region2: #{tpu_custom_call.1} parent=1 // pred_check
      _
    $region3: #{tpu_custom_call.1} parent=1 // pred_check_branch
      %11 = sbr.rel (0) target = $region5
    $region4: #{tpu_custom_call.1} parent=1 // pred_region
      %s12 = sadd.s32 0, 0
      %p13 = scmp.lt.s32.totalorder %s12, 0
      %s14 = scalar_select %p13, %s12, 0
      %s15 = smul.u32 4, %s14
      %s17 = ssub.s32 512, 512
      %18 = vsyncadd [#allocation4], %s17
      %s19 = smul.addr %s15, 128
      %s20 = scalar_lea.hbm %s0, %s19
      %s21 = sshll.u32 [#allocation3], 4
      %s22 = int_to_ptr.vmem [resolvable:$true] %s21
      %27 = dma.hbm_to_vmem [thread:$0]  %s20, 512, %s22, [#allocation4], 128, 128, 8
    $region5: #{tpu_custom_call.1} parent=1 // pred_fallthru
      _
    // Predicated region
    $region6: #{tpu_custom_call.1} parent=1 // pred_check
      _
    $region7: #{tpu_custom_call.1} parent=1 // pred_check_branch
      %29 = sbr.rel (0) target = $region9
    $region8: #{tpu_custom_call.1} parent=1 // pred_region
      %s30 = sadd.s32 0, 0
      %p31 = scmp.lt.s32.totalorder %s30, 0
      %s32 = scalar_select %p31, %s30, 0
      %s33 = smul.u32 4, %s32
      %s35 = ssub.s32 512, 512
      %36 = vsyncadd [#allocation7], %s35
      %s37 = smul.addr %s33, 128
      %s38 = scalar_lea.hbm %s1, %s37
      %s39 = sshll.u32 [#allocation6], 4
      %s40 = int_to_ptr.vmem [resolvable:$true] %s39
      %45 = dma.hbm_to_vmem [thread:$0]  %s38, 512, %s40, [#allocation7], 128, 128, 8
    $region9: #{tpu_custom_call.1} parent=1 // pred_fallthru
      _
    // Predicated region
    $region10: #{tpu_custom_call.1} parent=1 // pred_check
      _
    $region11: #{tpu_custom_call.1} parent=1 // pred_check_branch
      %47 = sbr.rel (0) target = $region13
    $region12: #{tpu_custom_call.1} parent=1 // pred_region
      %48 = dma.done [#allocation4], 512
    $region13: #{tpu_custom_call.1} parent=1 // pred_fallthru
      _
    // Predicated region
    $region14: #{tpu_custom_call.1} parent=1 // pred_check
      _
    $region15: #{tpu_custom_call.1} parent=1 // pred_check_branch
      %50 = sbr.rel (0) target = $region17
    $region16: #{tpu_custom_call.1} parent=1 // pred_region
      %51 = dma.done [#allocation7], 512
    $region17: #{tpu_custom_call.1} parent=1 // pred_fallthru
      _
    %s52 = sadd.s32 0, 0
    %p53 = scmp.lt.s32.totalorder %s52, 0
    %s54 = scalar_select %p53, %s52, 0
    %s55 = smul.u32 4, %s54
    %s56 = sadd.s32 0, 0
    %p57 = scmp.lt.s32.totalorder %s56, 0
    %s58 = scalar_select %p57, %s56, 0
    %s59 = smul.u32 4, %s58
    %p60 = scmp.eq.s32.totalorder 0, 0
    // Predicated region
    $region18: #{tpu_custom_call.1} parent=1 // pred_check
      %p61 = pneg %p60
    $region19: #{tpu_custom_call.1} parent=1 // pred_check_branch
      %63 = sbr.rel (%p61) target = $region21
    $region20: #{tpu_custom_call.1} parent=1 // pred_region
      %64 = vst [vmem:[#allocation2] sm:$0xff] 0.0
    $region21: #{tpu_custom_call.1} parent=1 // pred_fallthru
      _
    %s65 = sadd.s32 0, 0
    %s66 = smul.u32 %s65, 32
    %s67 = sadd.s32 %s66, 32
    %p68 = scmp.le.s32.totalorder %s67, 32
    // Predicated region
    $region22: #{tpu_custom_call.1} parent=1 // pred_check
      %p69 = pneg %p68
    $region23: #{tpu_custom_call.1} parent=1 // pred_check_branch
      %71 = sbr.rel (%p69) target = $region25
    $region24: #{tpu_custom_call.1} parent=1 // pred_region
      %v72 = vld [vmem:[#allocation3] sm:$0xff]
      %v73 = vld [vmem:[#allocation3 + $0x8] sm:$0xff]
      %v74 = vld [vmem:[#allocation3 + $0x10] sm:$0xff]
      %v75 = vld [vmem:[#allocation3 + $0x18] sm:$0xff]
      %v76 = vld [vmem:[#allocation6] sm:$0xff]
      %v77 = vld [vmem:[#allocation6 + $0x8] sm:$0xff]
      %v78 = vld [vmem:[#allocation6 + $0x10] sm:$0xff]
      %v79 = vld [vmem:[#allocation6 + $0x18] sm:$0xff]
      %v80 = vadd.f32 %v76, 1.1920929e-07
      %v81 = vadd.f32 %v77, 1.1920929e-07
      %v82 = vadd.f32 %v78, 1.1920929e-07
      %v83 = vadd.f32 %v79, 1.1920929e-07
      %v84 = vadd.f32 %v72, 1.1920929e-07
      %v85 = vadd.f32 %v73, 1.1920929e-07
      %v86 = vadd.f32 %v74, 1.1920929e-07
      %v87 = vadd.f32 %v75, 1.1920929e-07
      %v88 = vrcp.pop %v84
      %v89 = vmul.f32 %v80, %v88
      %v90 = vrcp.pop %v85
      %v91 = vmul.f32 %v81, %v90
      %v92 = vrcp.pop %v86
      %v93 = vmul.f32 %v82, %v92
      %v94 = vrcp.pop %v87
      %v95 = vmul.f32 %v83, %v94
      %v96 = vlog2.pop %v89
      %v97 = vmul.f32 %v96, 0.6931472
      %v98 = vlog2.pop %v91
      %v99 = vmul.f32 %v98, 0.6931472
      %v100 = vlog2.pop %v93
      %v101 = vmul.f32 %v100, 0.6931472
      %v102 = vlog2.pop %v95
      %v103 = vmul.f32 %v102, 0.6931472
      %v104 = vand.u32 2147483647, %v97
      %v105 = vand.u32 2147483647, %v99
      %v106 = vand.u32 2147483647, %v101
      %v107 = vand.u32 2147483647, %v103
      %v108 = vld [vmem:[#allocation2] sm:$0xff]
      %v109 = vadd.f32 %v104, %v105
      %v110 = vadd.f32 %v109, %v106
      %v111 = vadd.f32 %v110, %v107
      %v112 = vadd.f32 %v108, %v111
      %113 = vst [vmem:[#allocation2] sm:$0xff] %v112
    $region25: #{tpu_custom_call.1} parent=1 // pred_fallthru
      _
    %p114 = scmp.lt.s32.totalorder %s65, 1
    %p115 = scmp.gt.s32.totalorder %s67, 32
    %p116 = pnand %p114, %p115
    %p117 = pneg %p116
    // Predicated region
    $region26: #{tpu_custom_call.1} parent=1 // pred_check
      _
    $region27: #{tpu_custom_call.1} parent=1 // pred_check_branch
      %119 = sbr.rel (%p116) target = $region29
    $region28: #{tpu_custom_call.1} parent=1 // pred_region
      %v120 = vlaneseq
      %v121 = vshrl.u32 %v120, 7
      %v122 = vadd.s32 %v121, 8
      %v123 = vadd.s32 %v121, 16
      %v124 = vadd.s32 %v121, 24
      %v125 = vstv %s66
      %v126 = vadd.s32 %v125, %v121
      %v127 = vadd.s32 %v125, %v122
      %v128 = vadd.s32 %v125, %v123
      %v129 = vadd.s32 %v125, %v124
      %vm130 = vcmp.lt.s32.totalorder %v126, 32
      %vm131 = vcmp.lt.s32.totalorder %v127, 32
      %vm132 = vcmp.lt.s32.totalorder %v128, 32
      %vm133 = vcmp.lt.s32.totalorder %v129, 32
      %v134 = vld [vmem:[#allocation3] sm:$0xff]
      %v135 = vld [vmem:[#allocation3 + $0x8] sm:$0xff]
      %v136 = vld [vmem:[#allocation3 + $0x10] sm:$0xff]
      %v137 = vld [vmem:[#allocation3 + $0x18] sm:$0xff]
      %v138 = vsel %vm130, %v134, 1.0
      %v139 = vsel %vm131, %v135, 1.0
      %v140 = vsel %vm132, %v136, 1.0
      %v141 = vsel %vm133, %v137, 1.0
      %v142 = vld [vmem:[#allocation6] sm:$0xff]
      %v143 = vld [vmem:[#allocation6 + $0x8] sm:$0xff]
      %v144 = vld [vmem:[#allocation6 + $0x10] sm:$0xff]
      %v145 = vld [vmem:[#allocation6 + $0x18] sm:$0xff]
      %v146 = vsel %vm130, %v142, 1.0
      %v147 = vsel %vm131, %v143, 1.0
      %v148 = vsel %vm132, %v144, 1.0
      %v149 = vsel %vm133, %v145, 1.0
      %v150 = vadd.f32 %v146, 1.1920929e-07
      %v151 = vadd.f32 %v147, 1.1920929e-07
      %v152 = vadd.f32 %v148, 1.1920929e-07
      %v153 = vadd.f32 %v149, 1.1920929e-07
      %v154 = vadd.f32 %v138, 1.1920929e-07
      %v155 = vadd.f32 %v139, 1.1920929e-07
      %v156 = vadd.f32 %v140, 1.1920929e-07
      %v157 = vadd.f32 %v141, 1.1920929e-07
      %v158 = vrcp.pop %v154
      %v159 = vmul.f32 %v150, %v158
      %v160 = vrcp.pop %v155
      %v161 = vmul.f32 %v151, %v160
      %v162 = vrcp.pop %v156
      %v163 = vmul.f32 %v152, %v162
      %v164 = vrcp.pop %v157
      %v165 = vmul.f32 %v153, %v164
      %v166 = vlog2.pop %v159
      %v167 = vmul.f32 %v166, 0.6931472
      %v168 = vlog2.pop %v161
      %v169 = vmul.f32 %v168, 0.6931472
      %v170 = vlog2.pop %v163
      %v171 = vmul.f32 %v170, 0.6931472
      %v172 = vlog2.pop %v165
      %v173 = vmul.f32 %v172, 0.6931472
      %v174 = vand.u32 2147483647, %v167
      %v175 = vand.u32 2147483647, %v169
      %v176 = vand.u32 2147483647, %v171
      %v177 = vand.u32 2147483647, %v173
      %v178 = vld [vmem:[#allocation2] sm:$0xff]
      %v179 = vadd.f32 %v174, %v175
      %v180 = vadd.f32 %v179, %v176
      %v181 = vadd.f32 %v180, %v177
      %v182 = vadd.f32 %v178, %v181
      %183 = vst [vmem:[#allocation2] sm:$0xff] %v182
    $region29: #{tpu_custom_call.1} parent=1 // pred_fallthru
      _
    // Predicated region
    $region30: #{tpu_custom_call.1} parent=1 // pred_check
      %p184 = pneg %p60
    $region31: #{tpu_custom_call.1} parent=1 // pred_check_branch
      %186 = sbr.rel (%p184) target = $region33
    $region32: #{tpu_custom_call.1} parent=1 // pred_region
      %v187 = vld [vmem:[#allocation2] sm:$0xff]
      %188 = vadd.xlane.f32.xlu0 %v187
      %v189 = vpop.xlane.xlu0 %188
      %v190 = vrot.slane %v189, 4
      %v191 = vadd.f32 %v189, %v190
      %v192 = vrot.slane %v191, 2
      %v193 = vadd.f32 %v191, %v192
      %v194 = vrot.slane %v193, 1
      %v195 = vadd.f32 %v193, %v194
      %s196 = vtos %v195
      %s197 = scalar_lea.smem [#allocation8], 0
      %198 = sst [smem:[%s197]] %s196
    $region33: #{tpu_custom_call.1} parent=1 // pred_fallthru
      _
    // Predicated region
    $region34: #{tpu_custom_call.1} parent=1 // pred_check
      _
    $region35: #{tpu_custom_call.1} parent=1 // pred_check_branch
      %200 = sbr.rel (0) target = $region37
    $region36: #{tpu_custom_call.1} parent=1 // pred_region
      %s202 = ssub.s32 16, 16
      %203 = vsyncadd [#allocation5], %s202
      %206 = dma.smem_to_hbm [#allocation8], 16, %s2, [#allocation5]
    $region37: #{tpu_custom_call.1} parent=1 // pred_fallthru
      _
    // Predicated region
    $region38: #{tpu_custom_call.1} parent=1 // pred_check
      _
    $region39: #{tpu_custom_call.1} parent=1 // pred_check_branch
      %208 = sbr.rel (0) target = $region41
    $region40: #{tpu_custom_call.1} parent=1 // pred_region
      %209 = dma.done [#allocation5], 16
    $region41: #{tpu_custom_call.1} parent=1 // pred_fallthru
      _
    %210 = sfence
    %211 = vsyncpa [#allocation4], 1
    %212 = vsyncpa [#allocation7], 1
    %213 = vsyncpa [#allocation5], 1

</llo_original>
